<compile_context>
chip_gen: v7x
topology: tpu7x:2x2x1
jax: 0.10.0
libtpu: 0.0.40
codegen_flags: <defaults>
</compile_context>

<pallas_src>
import math

import jax
import jax.numpy as jnp
from jax.experimental import pallas as pl
from jax.experimental.pallas import tpu as pltpu


# ----------------------------------------------------------------------------
# Fixed sinusoid positional table (replicates PositionalEmbedding.__init__).
# ----------------------------------------------------------------------------
def sinusoid_position_table(n_position: int, d_model: int) -> jnp.ndarray:
    pos = jnp.arange(n_position, dtype=jnp.float32)[:, None]          # (P, 1)
    j = jnp.arange(d_model)
    expo = (2 * (j // 2)).astype(jnp.float32) / float(d_model)
    angle = pos / jnp.power(jnp.float32(10000.0), expo)[None, :]       # (P, D)
    even = (j % 2) == 0
    return jnp.where(even[None, :], jnp.sin(angle), jnp.cos(angle))    # (P, D)


def _pick_tile_len(L: int, target: int = 512) -> int:
    """Largest multiple-of-8 divisor of L that is <= target (else full L)."""
    if L <= target:
        return L
    for tl in range(target - target % 8, 7, -8):
        if L % tl == 0:
            return tl
    return L


# ----------------------------------------------------------------------------
# Wrapper + kernel
# ----------------------------------------------------------------------------
def data_embedding_wo_temp(x, conv_weight, pos_table, *, tile_len=None,
                           out_dtype=None):
    """Forward of DataEmbedding_wo_temp (eval mode).

    x:           (B, L, c_in)
    conv_weight: (d_model, c_in, 3)   -- PyTorch Conv1d weight layout
    pos_table:   (n_position, d_model) sinusoid table (n_position >= L)
    returns      (B, L, d_model) in out_dtype (defaults to x.dtype)
    """
    B, L, C = x.shape
    d_model, c_in, ksz = conv_weight.shape
    assert c_in == C and ksz == 3
    assert pos_table.ndim == 2
    assert pos_table.shape[0] >= L and pos_table.shape[1] == d_model

    TL = _pick_tile_len(L) if tile_len is None else int(tile_len)
    assert L % TL == 0 and (TL == L or TL % 8 == 0), (L, TL)
    T = L // TL

    if out_dtype is None:
        out_dtype = x.dtype

    # (d_model, C, 3) -> (3C, d_model): row index k*C + c holds W[d, c, k],
    # matching the [prev | cur | next] column order of the fused operand.
    w2 = jnp.transpose(conv_weight, (2, 1, 0)).reshape(3 * C, d_model)
    w2 = w2.astype(jnp.bfloat16)                       # bf16 for a 1-pass MXU matmul
    pos = pos_table[:L].astype(jnp.float32)            # added post-matmul in f32

    def kernel(x_ref, w_ref, pos_ref, o_ref, cat_ref):
        # x_ref:   (L, C)          full sequence, one batch element (small, resident)
        # w_ref:   (3C, d_model)   fused conv weight (bf16, resident)
        # pos_ref: (TL, d_model)   positional slab for this L tile (f32)
        # o_ref:   (TL, d_model)   output tile
        # cat_ref: (L, 3C) f32     scratch: [x_prev | x | x_next]
        xb = x_ref[...].astype(jnp.float32)
        x_prev = pltpu.roll(xb, shift=1, axis=0)        # x[(l-1) % L]
        x_next = pltpu.roll(xb, shift=L - 1, axis=0)    # x[(l+1) % L]
        cat_ref[...] = jnp.concatenate([x_prev, xb, x_next], axis=1)

        s = pl.program_id(0) * TL
        if TL % 8 == 0:
            s = pl.multiple_of(s, 8)
        x_tile = cat_ref[pl.ds(s, TL), :].astype(jnp.bfloat16)   # (TL, 3C)

        # Single fused-tap matmul, bf16 operands, f32 accumulation (default precision).
        y = jnp.dot(x_tile, w_ref[...], preferred_element_type=jnp.float32)
        o_ref[...] = (y + pos_ref[...]).astype(o_ref.dtype)

    out = pl.pallas_call(
        kernel,
        out_shape=jax.ShapeDtypeStruct((B, L, d_model), out_dtype),
        grid=(T, B),                                           # L tiles outer, batch inner
        in_specs=[
            pl.BlockSpec((None, L, C), lambda t, b: (b, 0, 0)),        # x[b] (full L)
            pl.BlockSpec((3 * C, d_model), lambda t, b: (0, 0)),       # weight (resident)
            pl.BlockSpec((TL, d_model), lambda t, b: (t, 0)),          # pos tile (per-t)
        ],
        out_specs=pl.BlockSpec((None, TL, d_model), lambda t, b: (b, t, 0)),
        scratch_shapes=[pltpu.VMEM((L, 3 * C), jnp.float32)],
        compiler_params=pltpu.CompilerParams(
            dimension_semantics=("parallel", "parallel"),      # megacore on both axes
            vmem_limit_bytes=32 * 1024 * 1024,                 # v5e default is 16 MiB
        ),
    )(x, w2, pos)
    return out


# ----------------------------------------------------------------------------
# Demo / self-check
# ----------------------------------------------------------------------------
def _reference(x, conv_w, pos_tab):
    """Pure-JAX f32 reference with bf16-rounded operands (kernel numerics)."""
    B, L, C = x.shape
    xr = x.astype(jnp.bfloat16).astype(jnp.float32)
    wr = conv_w.astype(jnp.bfloat16).astype(jnp.float32)
    x_pad = jnp.concatenate([xr[:, -1:], xr, xr[:, :1]], axis=1)        # (B, L+2, C)
    win = jnp.stack([x_pad[:, k:k + L] for k in range(3)], axis=2)      # (B, L, 3, C)
    w_t = jnp.transpose(wr, (2, 1, 0))                                  # (3, C, D)
    conv = (win[:, :, :, :, None] * w_t[None, None]).sum(axis=(2, 3))   # (B, L, D)
    return conv + pos_tab[:L].astype(jnp.float32)[None]


if __name__ == "__main__":
    key = jax.random.PRNGKey(0)

    def check(B, L, c_in, d_model, tile_len, k):
        kx, kw = jax.random.split(k)
        x = jax.random.normal(kx, (B, L, c_in), dtype=jnp.float32)
        # Kaiming-normal (fan_in, leaky_relu) init of the TokenEmbedding conv weight.
        fan_in = c_in * 3
        gain = math.sqrt(2.0 / (1.0 + 0.01 ** 2))
        conv_w = (gain / math.sqrt(fan_in)) * jax.random.normal(
            kw, (d_model, c_in, 3), dtype=jnp.float32)
        pos_tab = sinusoid_position_table(max(64, L), d_model)

        out = jax.block_until_ready(
            data_embedding_wo_temp(x, conv_w, pos_tab, tile_len=tile_len))
        ref = _reference(x, conv_w, pos_tab)
        assert out.shape == (B, L, d_model)
        max_err = float(jnp.max(jnp.abs(out - ref)))
        assert jnp.allclose(out, ref, atol=1e-3, rtol=1e-3), max_err

    k1, k2 = jax.random.split(key)
    check(2, 8, 4, 32, None, k1)   # single-tile path (B=2, L=8, c_in=4, d_model=32)
    check(2, 16, 4, 32, 8, k2)     # L-tiled path (TL=8, T=2): circular halo across tiles
    print("KERNEL_OK")
</pallas_src>

<mosaic_0001>
module attributes {stable_mosaic.version = 11 : i64} {
  func.func @kernel(%arg0: i32, %arg1: i32, %arg2: memref<1x8x4xf32, #tpu.memory_space<vmem>>, %arg3: memref<12x32xbf16, #tpu.memory_space<vmem>>, %arg4: memref<8x32xf32, #tpu.memory_space<vmem>>, %arg5: memref<1x8x32xf32, #tpu.memory_space<vmem>>, %arg6: memref<8x12xf32, #tpu.memory_space<vmem>>) attributes {dimension_semantics = [#tpu.dimension_semantics<parallel>, #tpu.dimension_semantics<parallel>], iteration_bounds = array<i64: 1, 2>, scalar_prefetch = 0 : i64, scratch_operands = 1 : i64, tpu.core_type = #tpu.core_type<tc>, window_params = [{transform_indices = @transform_0, window_bounds = array<i64: 1, 8, 4>}, {pipeline_mode = #tpu.pipeline_mode<synchronous>, transform_indices = @transform_1, window_bounds = array<i64: 12, 32>}, {transform_indices = @transform_2, window_bounds = array<i64: 8, 32>}, {transform_indices = @transform_3, window_bounds = array<i64: 1, 8, 32>}]} {
    %c0 = arith.constant 0 : index
    %c0_0 = arith.constant 0 : index
    %c0_1 = arith.constant 0 : index
    %0 = vector.load %arg2[%c0, %c0_0, %c0_1] : memref<1x8x4xf32, #tpu.memory_space<vmem>>, vector<1x8x4xf32>
    %1 = vector.shape_cast %0 : vector<1x8x4xf32> to vector<8x4xf32>
    %c1_i32 = arith.constant 1 : i32
    %2 = tpu.dynamic_rotate %1 by %c1_i32 dim 0 : vector<8x4xf32>, i32 -> vector<8x4xf32>
    %c7_i32 = arith.constant 7 : i32
    %3 = tpu.dynamic_rotate %1 by %c7_i32 dim 0 : vector<8x4xf32>, i32 -> vector<8x4xf32>
    %4 = tpu.concatenate %2, %1, %3 in 1 : vector<8x4xf32>, vector<8x4xf32>, vector<8x4xf32> -> vector<8x12xf32>
    %c0_2 = arith.constant 0 : index
    %c0_3 = arith.constant 0 : index
    %5 = vector.load %arg6[%c0_2, %c0_3] : memref<8x12xf32, #tpu.memory_space<vmem>>, vector<8x12xf32>
    tpu.vector_store %arg6[%c0_2, %c0_3], %4 {strides = array<i32>} : memref<8x12xf32, #tpu.memory_space<vmem>>, vector<8x12xf32>,
    %c8_i32 = arith.constant 8 : i32
    %6 = arith.muli %arg0, %c8_i32 : i32
    %7 = tpu.assume_multiple %6, 8 : i32
    %8 = arith.index_cast %7 : i32 to index
    %c0_4 = arith.constant 0 : index
    %9 = vector.load %arg6[%8, %c0_4] : memref<8x12xf32, #tpu.memory_space<vmem>>, vector<8x12xf32>
    %10 = arith.truncf %9 : vector<8x12xf32> to vector<8x12xbf16>
    %c0_5 = arith.constant 0 : index
    %c0_6 = arith.constant 0 : index
    %11 = vector.load %arg3[%c0_5, %c0_6] : memref<12x32xbf16, #tpu.memory_space<vmem>>, vector<12x32xbf16>
    %cst = arith.constant dense<0.000000e+00> : vector<8x32xf32>
    %12 = tpu.matmul %10, %11, %cst {dimension_numbers = #tpu.dot_dimension_numbers<[1], [0], [0], [1], [0, 0, 1, 1], [], []>} : vector<8x12xbf16>, vector<12x32xbf16>, vector<8x32xf32> -> vector<8x32xf32>
    %c0_7 = arith.constant 0 : index
    %c0_8 = arith.constant 0 : index
    %13 = vector.load %arg4[%c0_7, %c0_8] : memref<8x32xf32, #tpu.memory_space<vmem>>, vector<8x32xf32>
    %14 = arith.addf %12, %13 : vector<8x32xf32>
    %c0_9 = arith.constant 0 : index
    %c0_10 = arith.constant 0 : index
    %c0_11 = arith.constant 0 : index
    %15 = vector.load %arg5[%c0_9, %c0_10, %c0_11] : memref<1x8x32xf32, #tpu.memory_space<vmem>>, vector<1x8x32xf32>
    %16 = vector.shape_cast %15 : vector<1x8x32xf32> to vector<8x32xf32>
    %17 = vector.shape_cast %14 : vector<8x32xf32> to vector<1x8x32xf32>
    tpu.vector_store %arg5[%c0_9, %c0_10, %c0_11], %17 {strides = array<i32>} : memref<1x8x32xf32, #tpu.memory_space<vmem>>, vector<1x8x32xf32>,
    return
  }
  func.func @transform_0(%arg0: i32, %arg1: i32) -> (i32, i32, i32) {
    %c0_i32 = arith.constant 0 : i32
    %c0_i32_0 = arith.constant 0 : i32
    %c0_i32_1 = arith.constant 0 : i32
    return %arg1, %c0_i32, %c0_i32_0 : i32, i32, i32
  }
  func.func @transform_1(%arg0: i32, %arg1: i32) -> (i32, i32) {
    %c0_i32 = arith.constant 0 : i32
    %c0_i32_0 = arith.constant 0 : i32
    %c0_i32_1 = arith.constant 0 : i32
    return %c0_i32, %c0_i32_0 : i32, i32
  }
  func.func @transform_2(%arg0: i32, %arg1: i32) -> (i32, i32) {
    %c0_i32 = arith.constant 0 : i32
    %c0_i32_0 = arith.constant 0 : i32
    return %arg0, %c0_i32 : i32, i32
  }
  func.func @transform_3(%arg0: i32, %arg1: i32) -> (i32, i32, i32) {
    %c0_i32 = arith.constant 0 : i32
    %c0_i32_0 = arith.constant 0 : i32
    return %arg1, %arg0, %c0_i32 : i32, i32, i32
  }
}

</mosaic_0001>

<llo_original>
// kernel: tpu_custom_call.1
$region0: #{tpu_custom_call.1}
  #allocation0 [shape = 'u32[]', space=smem, size = 0x4, offset = 0x4, fixed_abs, tag = 'smem constant byte address 0x4 - core index']
  #allocation1 [shape = 'u32[144,128]{1,0:T(1,128)}', space=vmem, size = 0x12000, scoped, tag = 'internal scratch']
  #allocation2 [shape = 'f32[8,12]{1,0:T(8,128)}', space=vmem, size = 0x1000, scoped, tag = 'scratch operand']
  %s0 = inlined_call_operand.vmem [shape: f32[2,8,4], index: 0, kind: input, shape index: {}]
  %s1 = inlined_call_operand.vmem [shape: bf16[12,32], index: 1, kind: input, shape index: {}]
  %s2 = inlined_call_operand.vmem [shape: f32[8,32], index: 2, kind: input, shape index: {}]
  %s3 = inlined_call_operand.hbm [shape: f32[2,8,32], index: 3, kind: output, shape index: {}]
  %s4 = sld [smem:[#allocation0]]
  $region45: #{tpu_custom_call.1} parent=0
    _
  %s6 = ssub.s32 1, %s4
  %s7 = scalar_select 0, %s6, %s4
  $region1: #{tpu_custom_call.1} parent=0
    #allocation3 [shape = 'u8[8192]{0}', space=vmem, size = 0x2000, scoped, tag = 'output window, operand 0']
    #allocation4 [shape = 's32[2]{0}', space=sflag, size = 0x8, scoped, tag = 'scoped memory for tpu_custom_call.1']
    %8 = vsyncpa [#allocation4], 0
    %s9 = scalar_lea.sflag [#allocation4], 1
    %10 = vsyncpa %s9, 0
    loop: start=0, step=1, limit=4
    $region2: #{tpu_custom_call.1} parent=1 // loop_pre_header
      _
    $region3: #{tpu_custom_call.1} parent=1 // loop_header
      %s12 = sphi 0, %s16
      %p13 = scmp.ge.s32.totalorder %s12, 4
      %s19 = sphi 0, %s31
      %s20 = sphi 0, %s27
      %s21 = sphi 0, %s19
      %s22 = sphi 0, %s20
      %s23 = sphi 0, %s21
      %s24 = sphi 0, %s22
      %s34 = sphi 0, %s36
      %s37 = sphi 0, %s34
      %s38 = sphi 0, %s37
      %s54 = sphi 0, %s38
      %s58 = sphi 0, %s58
      %s60 = sphi 0, %s58
      %s61 = sphi 0, %s60
      %s75 = sphi 0, %s61
      %s81 = sphi 0, %s83
      %s84 = sphi 0, %s81
      %s85 = sphi 0, %s84
      %s101 = sphi 0, %s85
      %s109 = sphi 0, %s111
      %s112 = sphi 0, %s109
      %s113 = sphi 0, %s112
      %s129 = sphi 0, %s113
    $region4: #{tpu_custom_call.1} parent=1 // loop_header_branch
      %15 = sbr.rel (%p13) target = $region8
    $region5: #{tpu_custom_call.1} parent=1 // loop_body
      %s17 = ssub.s32 %s12, 1
      %s18 = ssub.s32 %s12, 2
      %s25 = sadd.s32 1, %s20
      %p26 = scmp.ge.s32.totalorder %s25, 2
      %s27 = scalar_select %p26, 0, %s25
      %s28 = sadd.s32 1, %s19
      %s29 = scalar_select %p26, %s28, %s19
      %p30 = scmp.ge.s32.totalorder %s29, 1
      %s31 = scalar_select %p30, 0, %s29
      %s32 = ssub.s32 %s20, %s27
      %p33 = scmp.eq.s32.totalorder %s32, 0
      %s35 = sadd.s32 %s34, 1
      %s36 = scalar_select %p33, %s34, %s35
      %p39 = pneg %p33
      %p40 = scmp.eq.s32.totalorder %s12, 1
      %p41 = por %p39, %p40
      %p42 = scmp.ne.s32.totalorder %s34, %s37
      %p43 = scmp.eq.s32.totalorder %s12, 0
      %p44 = por %p42, %p43
      %p45 = scmp.ne.s32.totalorder %s34, %s37
      %p46 = scmp.eq.s32.totalorder %s17, 1
      %p47 = por %p45, %p46
      %p48 = scmp.ne.s32.totalorder %s37, %s38
      %p49 = scmp.eq.s32.totalorder %s17, 0
      %p50 = por %p48, %p49
      %p51 = scmp.ne.s32.totalorder %s37, %s38
      %p52 = scmp.eq.s32.totalorder %s18, 1
      %p53 = por %p51, %p52
      %p55 = scmp.ne.s32.totalorder %s38, %s54
      %p56 = scmp.eq.s32.totalorder %s18, 0
      %p57 = por %p55, %p56
      %s59 = sadd.s32 %s58, 1
      %p62 = scmp.eq.s32.totalorder %s12, 1
      %p63 = scmp.ne.s32.totalorder %s58, %s60
      %p64 = scmp.eq.s32.totalorder %s12, 0
      %p65 = por %p63, %p64
      %p66 = scmp.ne.s32.totalorder %s58, %s60
      %p67 = scmp.eq.s32.totalorder %s17, 1
      %p68 = por %p66, %p67
      %p69 = scmp.ne.s32.totalorder %s60, %s61
      %p70 = scmp.eq.s32.totalorder %s17, 0
      %p71 = por %p69, %p70
      %p72 = scmp.ne.s32.totalorder %s60, %s61
      %p73 = scmp.eq.s32.totalorder %s18, 1
      %p74 = por %p72, %p73
      %p76 = scmp.ne.s32.totalorder %s61, %s75
      %p77 = scmp.eq.s32.totalorder %s18, 0
      %p78 = por %p76, %p77
      %s79 = ssub.s32 %s19, %s31
      %p80 = scmp.eq.s32.totalorder %s79, 0
      %s82 = sadd.s32 %s81, 1
      %s83 = scalar_select %p80, %s81, %s82
      %p86 = pneg %p80
      %p87 = scmp.eq.s32.totalorder %s12, 1
      %p88 = por %p86, %p87
      %p89 = scmp.ne.s32.totalorder %s81, %s84
      %p90 = scmp.eq.s32.totalorder %s12, 0
      %p91 = por %p89, %p90
      %p92 = scmp.ne.s32.totalorder %s81, %s84
      %p93 = scmp.eq.s32.totalorder %s17, 1
      %p94 = por %p92, %p93
      %p95 = scmp.ne.s32.totalorder %s84, %s85
      %p96 = scmp.eq.s32.totalorder %s17, 0
      %p97 = por %p95, %p96
      %p98 = scmp.ne.s32.totalorder %s84, %s85
      %p99 = scmp.eq.s32.totalorder %s18, 1
      %p100 = por %p98, %p99
      %p102 = scmp.ne.s32.totalorder %s85, %s101
      %p103 = scmp.eq.s32.totalorder %s18, 0
      %p104 = por %p102, %p103
      %s105 = ssub.s32 %s20, %s27
      %s106 = ssub.s32 %s19, %s31
      %s107 = sor.u32 %s105, %s106
      %p108 = scmp.eq.s32.totalorder %s107, 0
      %s110 = sadd.s32 %s109, 1
      %s111 = scalar_select %p108, %s109, %s110
      %p114 = pneg %p108
      %p115 = scmp.eq.s32.totalorder %s12, 1
      %p116 = por %p114, %p115
      %p117 = scmp.ne.s32.totalorder %s109, %s112
      %p118 = scmp.eq.s32.totalorder %s12, 0
      %p119 = por %p117, %p118
      %p120 = scmp.ne.s32.totalorder %s109, %s112
      %p121 = scmp.eq.s32.totalorder %s17, 1
      %p122 = por %p120, %p121
      %p123 = scmp.ne.s32.totalorder %s112, %s113
      %p124 = scmp.eq.s32.totalorder %s17, 0
      %p125 = por %p123, %p124
      %p126 = scmp.ne.s32.totalorder %s112, %s113
      %p127 = scmp.eq.s32.totalorder %s18, 1
      %p128 = por %p126, %p127
      %p130 = scmp.ne.s32.totalorder %s113, %s129
      %p131 = scmp.eq.s32.totalorder %s18, 0
      %p132 = por %p130, %p131
      %p133 = scmp.le.s32.totalorder 1, %s12
      %p134 = scmp.lt.s32.totalorder %s12, 3
      %p135 = pnand %p133, %p134
      %p136 = pneg %p135
      // Predicated region
      $region9: #{tpu_custom_call.1} parent=5 // pred_check
        _
      $region10: #{tpu_custom_call.1} parent=5 // pred_check_branch
        %138 = sbr.rel (%p135) target = $region12
      $region11: #{tpu_custom_call.1} parent=5 // pred_region
        %s139 = ssub.s32 %s12, 1
        // Predicated region
        $region13: #{tpu_custom_call.1} parent=11 // pred_check
          %p140 = pneg %p71
        $region14: #{tpu_custom_call.1} parent=11 // pred_check_branch
          %142 = sbr.rel (%p140) target = $region16
        $region15: #{tpu_custom_call.1} parent=11 // pred_region
          _
        $region16: #{tpu_custom_call.1} parent=11 // pred_fallthru
          _
        // Predicated region
        $region17: #{tpu_custom_call.1} parent=11 // pred_check
          %p143 = pneg %p97
        $region18: #{tpu_custom_call.1} parent=11 // pred_check_branch
          %145 = sbr.rel (%p143) target = $region20
        $region19: #{tpu_custom_call.1} parent=11 // pred_region
          %p146 = scmp.lt.s32.totalorder %s21, 0
          %s147 = scalar_select %p146, %s21, 0
          %s148 = smul.addr %s147, 8
          %s149 = scalar_lea.vmem %s2, %s148
        $region20: #{tpu_custom_call.1} parent=11 // pred_fallthru
          _
      $region12: #{tpu_custom_call.1} parent=5 // pred_fallthru
        _
      %p150 = scmp.lt.s32.totalorder %s12, 2
      // Predicated region
      $region21: #{tpu_custom_call.1} parent=5 // pred_check
        %p151 = pneg %p150
      $region22: #{tpu_custom_call.1} parent=5 // pred_check_branch
        %153 = sbr.rel (%p151) target = $region24
      $region23: #{tpu_custom_call.1} parent=5 // pred_region
        // Predicated region
        $region25: #{tpu_custom_call.1} parent=23 // pred_check
          %p154 = pneg %p44
        $region26: #{tpu_custom_call.1} parent=23 // pred_check_branch
          %156 = sbr.rel (%p154) target = $region28
        $region27: #{tpu_custom_call.1} parent=23 // pred_region
          %p157 = scmp.lt.s32.totalorder %s20, 1
          %s158 = scalar_select %p157, %s20, 1
          %s159 = smul.addr %s158, 8
          %s160 = scalar_lea.vmem %s0, %s159
        $region28: #{tpu_custom_call.1} parent=23 // pred_fallthru
          _
      $region24: #{tpu_custom_call.1} parent=5 // pred_fallthru
        _
      %p161 = scmp.le.s32.totalorder 1, %s12
      %p162 = scmp.lt.s32.totalorder %s12, 3
      %p163 = pnand %p161, %p162
      %p164 = pneg %p163
      // Predicated region
      $region29: #{tpu_custom_call.1} parent=5 // pred_check
        _
      $region30: #{tpu_custom_call.1} parent=5 // pred_check_branch
        %166 = sbr.rel (%p163) target = $region32
      $region31: #{tpu_custom_call.1} parent=5 // pred_region
        %s167 = ssub.s32 %s12, 1
        %p168 = scmp.lt.s32.totalorder %s22, 1
        %s169 = scalar_select %p168, %s22, 1
        %s170 = smul.addr %s169, 8
        %s171 = scalar_lea.vmem %s0, %s170
        %p172 = pneg %p50
        %p173 = pneg %p47
        %p174 = pneg %p71
        %p175 = pneg %p68
        %p176 = scmp.lt.s32.totalorder %s21, 0
        %s177 = scalar_select %p176, %s21, 0
        %s178 = smul.addr %s177, 8
        %s179 = scalar_lea.vmem %s2, %s178
        %p180 = pneg %p97
        %p181 = pneg %p94
        %p182 = pneg %p125
        %p183 = pneg %p122
        %s184 = sand.u32 %s112, 1
        %s185 = scalar_lea.sflag [#allocation4], %s184
        %s186 = sand.u32 %s112, 1
        %s187 = smul.addr %s186, 8
        %s188 = scalar_lea.vmem [#allocation3], %s187
        %p189 = scmp.lt.s32.totalorder %s22, 1
        %s190 = scalar_select %p189, %s22, 1
        %s191 = smul.addr %s190, 8
        %s192 = scalar_lea.vmem %s0, %s191
        %p193 = scmp.lt.s32.totalorder %s21, 0
        %s194 = scalar_select %p193, %s21, 0
        %s195 = smul.addr %s194, 8
        %s196 = scalar_lea.vmem %s2, %s195
        %v198 = vld [vmem:[%s192] sm:$0xff]
        %v199 = vrot.slane %v198, 7
        %v200 = vrot.slane %v198, 1
        %202 = vrot.lane.b32.xlu0 %v198, 4
        %v203 = vpop.permute.xlu0 %202
        %206 = vrot.lane.b32.xlu0 %v200, 8
        %v207 = vpop.permute.xlu0 %206
        %vm209 = vcmask 31744
        %v210 = vsel %vm209, %v199, %v203
        %vm211 = vcmask 64512
        %v212 = vsel %vm211, %v210, %v207
        %vm213 = vcmask 97280
        %214 = vst.msk [vmem:[#allocation2] sm:$0xff] %vm213, %v212
        %s215 = smul.u32 %s21, 8
        %s216 = scalar_lea.vmem [#allocation2], %s215
        %v217 = vld [vmem:[%s216] sm:$0xff]
        %v218 = vpack.c.bf16 %v217, %v217
        %v219 = vld [vmem:[%s1] sm:$0xf]
        %v220 = vld [vmem:[%s1 + $0x4] sm:$0x3]
        %v221 = vld [vmem:[%s196] sm:$0xff]
        %v224 = vunpack.c.l.b16 %v219
        %v225 = vunpack.c.l.b16 %v220
        %v226 = vpack.c.b16 %v225, %v224
        %v228 = vsel %vm213, %v218, 0
        %vm230 = vcmask 1045504
        %v232 = vsel %vm230, %v226, 0
        %234 = vmatprep.subr.bf16.mxu0 0
        %235 = vmatpush1.bf16.msra.mxu0 %v232
        %236 = vmatprep.subr.bf16.mxu0 0
        %237 = vmatpush1.bf16.msra.mxu0 0
        %238 = vmatprep.subr.bf16.mxu0 0
        %239 = vmatpush1.bf16.msra.mxu0 0
        %240 = vmatprep.subr.bf16.mxu0 0
        %241 = vmatpush1.bf16.msra.mxu0 0
        %242 = vmatprep.subr.bf16.mxu0 0
        %243 = vmatpush1.bf16.msra.mxu0 0
        %244 = vmatprep.subr.bf16.mxu0 0
        %245 = vmatpush1.bf16.msra.mxu0 0
        %246 = vmatprep.subr.bf16.mxu0 0
        %247 = vmatpush1.bf16.msra.mxu0 0
        %248 = vmatprep.subr.bf16.mxu0 0
        %249 = vmatpush1.bf16.msra.mxu0 0
        %250 = vmatprep.subr.bf16.mxu0 0
        %251 = vmatpush1.bf16.msra.mxu0 0
        %252 = vmatprep.subr.bf16.mxu0 0
        %253 = vmatpush1.bf16.msra.mxu0 0
        %254 = vmatprep.subr.bf16.mxu0 0
        %255 = vmatpush1.bf16.msra.mxu0 0
        %256 = vmatprep.subr.bf16.mxu0 0
        %257 = vmatpush1.bf16.msra.mxu0 0
        %258 = vmatprep.subr.bf16.mxu0 0
        %259 = vmatpush1.bf16.msra.mxu0 0
        %260 = vmatprep.subr.bf16.mxu0 0
        %261 = vmatpush1.bf16.msra.mxu0 0
        %262 = vmatprep.subr.bf16.mxu0 0
        %263 = vmatpush1.bf16.msra.mxu0 0
        %264 = vmatprep.subr.bf16.mxu0 0
        %265 = vmatpush1.bf16.msra.mxu0 0
        %266 = vmatprep.mubr.bf16.mxu0 0
        %267 = vmatmul.mubr.bf16.gmra.mrb[0].mxu0 %v228
        %v268 = vpop.f32.mrb[0].mxu0
        %v269 = vadd.f32 %v221, %v268
        %v270 = vpop.f32.mrb[0].mxu0
        %v271 = vpop.f32.mrb[0].mxu0
        %v272 = vpop.f32.mrb[0].mxu0
        %273 = vdwg.mxu0
        %vm274 = vcmask 261120
        %275 = vst.msk [vmem:[%s188] sm:$0xff] %vm274, %v269
        %s276 = sand.u32 %s112, 1
        %s277 = scalar_lea.sflag [#allocation4], %s276
        %s278 = sand.u32 %s112, 1
        %s279 = smul.addr %s278, 8
        %s280 = scalar_lea.vmem [#allocation3], %s279
        // Predicated region
        $region33: #{tpu_custom_call.1} parent=31 // pred_check
          %p281 = pneg %p122
        $region34: #{tpu_custom_call.1} parent=31 // pred_check_branch
          %283 = sbr.rel (%p281) target = $region36
        $region35: #{tpu_custom_call.1} parent=31 // pred_region
          %s285 = ssub.s32 128, 128
          %286 = vsyncadd %s277, %s285
          %s287 = sadd.s32 %s21, %s22
          %s288 = smul.addr %s287, 128
          %s289 = scalar_lea.hbm %s3, %s288
          %s291 = sshll.u32 %s280, 4
          %s292 = int_to_ptr.vmem [resolvable:$true] %s291
          %294 = dma.vmem_to_hbm [thread:$0]  %s292, 128, %s289, %s277
        $region36: #{tpu_custom_call.1} parent=31 // pred_fallthru
          _
      $region32: #{tpu_custom_call.1} parent=5 // pred_fallthru
        _
      %p295 = scmp.le.s32.totalorder 2, %s12
      // Predicated region
      $region37: #{tpu_custom_call.1} parent=5 // pred_check
        %p296 = pneg %p295
      $region38: #{tpu_custom_call.1} parent=5 // pred_check_branch
        %298 = sbr.rel (%p296) target = $region40
      $region39: #{tpu_custom_call.1} parent=5 // pred_region
        %s299 = ssub.s32 %s12, 2
        // Predicated region
        $region41: #{tpu_custom_call.1} parent=39 // pred_check
          %p300 = pneg %p128
        $region42: #{tpu_custom_call.1} parent=39 // pred_check_branch
          %302 = sbr.rel (%p300) target = $region44
        $region43: #{tpu_custom_call.1} parent=39 // pred_region
          %s303 = sand.u32 %s113, 1
          %s304 = scalar_lea.sflag [#allocation4], %s303
          %s305 = sand.u32 %s113, 1
          %s306 = smul.addr %s305, 8
          %s307 = scalar_lea.vmem [#allocation3], %s306
          %308 = dma.done %s304, 128
        $region44: #{tpu_custom_call.1} parent=39 // pred_fallthru
          _
      $region40: #{tpu_custom_call.1} parent=5 // pred_fallthru
        _
    $region6: #{tpu_custom_call.1} parent=1 // loop_footer
      %s16 = sadd.s32 1, %s12
    $region7: #{tpu_custom_call.1} parent=1 // loop_footer_branch
      %11 = sbr.rel target = $region3
    $region8: #{tpu_custom_call.1} parent=1 // loop_exit
      _
    %309 = vsyncpa [#allocation4], 1
    %s310 = scalar_lea.sflag [#allocation4], 1
    %311 = vsyncpa %s310, 1

</llo_original>
